<compile_context>
chip_gen: v7x
topology: tpu7x:2x2x1
jax: 0.10.0
libtpu: 0.0.40
codegen_flags: <defaults>
</compile_context>

<pallas_src>
import functools

import jax
import jax.numpy as jnp
from jax import lax
from jax.experimental import pallas as pl
from jax.experimental.pallas import tpu as pltpu

NUM_CLASSES = 2
FEAT = 256
PAD_LANES = 128          # padded class/lane dimension for the MXU matmul
DEFAULT_TILE = 4096      # rows per grid block


def _round_up(n, m):
    return ((n + m - 1) // m) * m


def _train_kernel(x_ref, w_ref, b_ref, lbl_ref,
                  ps_ref, loss_ref, corr_ref, *, n_valid):
    """Training path.

    Outputs per block:
      ps_ref   (tile, 2)  : softmax probs (p0, p1)
      loss_ref (1, 1, 1)  : sum of per-row CE loss over valid rows
      corr_ref (1, 1, 1)  : sum of per-row correct flags over valid rows
    """
    tile = x_ref.shape[0]

    # ---- FC on the MXU; only lanes 0..1 of the padded weight are real ----
    logits = jnp.dot(x_ref[...], w_ref[...],
                     preferred_element_type=jnp.float32)

    # Static lane slices + post-slice scalar bias (SMEM) -> (tile, 1) columns.
    z0 = logits[:, 0:1] + b_ref[0]
    z1 = logits[:, 1:2] + b_ref[1]

    # ---- binary softmax / cross-entropy identities ----
    d = z1 - z0
    p1 = 1.0 / (1.0 + jnp.exp(-d))           # sigmoid(d) == softmax(z)[:, 1]
    p0 = 1.0 - p1

    lbl = lbl_ref[...]                        # (tile, 1) int32 in {0, 1}
    t = jnp.where(lbl == 1, -d, d)
    # stable softplus(t) == -log softmax(z)[label]
    per_loss = jnp.maximum(t, 0.0) + jnp.log(1.0 + jnp.exp(-jnp.abs(t)))

    pred1 = jnp.round(p1)                     # torch.round(softmax)[:, 1]
    correct = (pred1 == lbl.astype(jnp.float32)).astype(jnp.float32)

    # Mask padded tail rows so they do not leak into the partial sums.
    row = pl.program_id(0) * tile + lax.broadcasted_iota(jnp.int32, (tile, 1), 0)
    valid = (row < n_valid).astype(jnp.float32)

    ps_ref[:, 0:1] = p0
    ps_ref[:, 1:2] = p1
    loss_ref[...] = jnp.sum(per_loss * valid, axis=0, keepdims=True).reshape(1, 1, 1)
    corr_ref[...] = jnp.sum(correct * valid, axis=0, keepdims=True).reshape(1, 1, 1)


def _infer_kernel(x_ref, w_ref, b_ref, out_ref):
    """Inference path: only the class-1 logit per row (no softmax/round/loss)."""
    logits = jnp.dot(x_ref[...], w_ref[...],
                     preferred_element_type=jnp.float32)
    out_ref[...] = logits[:, 1:2] + b_ref[1]


def _pad_weight(fc_weight, dtype):
    w_pad = jnp.zeros((FEAT, PAD_LANES), dtype)
    w_pad = w_pad.at[:, :NUM_CLASSES].set(fc_weight.T.astype(dtype))
    return w_pad


def loss_av_forward(x, fc_weight, fc_bias, labels=None, tile=DEFAULT_TILE):
    """JAX/Pallas equivalent of lossAV.forward.

    x:         (N, 1, 256) float32 or bfloat16
    fc_weight: (2, 256)    float32 (PyTorch nn.Linear convention)
    fc_bias:   (2,)        float32
    labels:    (N,) int in {0, 1} or None
    """
    N = x.shape[0]
    x2 = x.reshape(N, FEAT)
    if x2.dtype != jnp.bfloat16:
        x2 = x2.astype(jnp.float32)           # bf16 stays bf16 (MXU-native)

    # Tile: multiple of 8, <= requested, and <= ceil(N/2) rows so large-N
    # problems get >= 2 grid blocks (feeds both v7x TensorCores).
    half_rows = _round_up(max((N + 1) // 2, 1), 8)
    tile = max(8, min(int(tile), half_rows))
    n_pad = _round_up(N, tile)
    grid_n = n_pad // tile
    if n_pad != N:
        x2 = jnp.pad(x2, ((0, n_pad - N), (0, 0)))   # tail rows masked/sliced

    w_pad = _pad_weight(fc_weight, x2.dtype)
    b_vec = fc_bias.astype(jnp.float32).reshape(NUM_CLASSES)

    x_spec = pl.BlockSpec((tile, FEAT), lambda i: (i, 0))
    w_spec = pl.BlockSpec((FEAT, PAD_LANES), lambda i: (0, 0))
    b_spec = pl.BlockSpec(memory_space=pltpu.MemorySpace.SMEM)
    cparams = pltpu.CompilerParams(
        dimension_semantics=("parallel",),            # blocks are independent
        vmem_limit_bytes=32 * 1024 * 1024)

    if labels is None:
        z1 = pl.pallas_call(
            _infer_kernel,
            out_shape=jax.ShapeDtypeStruct((n_pad, 1), jnp.float32),
            grid=(grid_n,),
            in_specs=[x_spec, w_spec, b_spec],
            out_specs=pl.BlockSpec((tile, 1), lambda i: (i, 0)),
            compiler_params=cparams,
        )(x2, w_pad, b_vec)
        # TODO(synk): PyTorch returns .detach().cpu().numpy(); we return a device array.
        return z1[:N, 0]                              # predScore = class-1 logit

    labels_i = jnp.asarray(labels).astype(jnp.int32).reshape(N, 1)
    if n_pad != N:
        labels_i = jnp.pad(labels_i, ((0, n_pad - N), (0, 0)))
    lbl_spec = pl.BlockSpec((tile, 1), lambda i: (i, 0))

    kernel = functools.partial(_train_kernel, n_valid=N)
    ps, loss_part, corr_part = pl.pallas_call(
        kernel,
        out_shape=(
            jax.ShapeDtypeStruct((n_pad, NUM_CLASSES), jnp.float32),
            jax.ShapeDtypeStruct((grid_n, 1, 1), jnp.float32),
            jax.ShapeDtypeStruct((grid_n, 1, 1), jnp.float32),
        ),
        grid=(grid_n,),
        in_specs=[x_spec, w_spec, b_spec, lbl_spec],
        out_specs=(
            pl.BlockSpec((tile, NUM_CLASSES), lambda i: (i, 0)),
            pl.BlockSpec((1, 1, 1), lambda i: (i, 0, 0)),
            pl.BlockSpec((1, 1, 1), lambda i: (i, 0, 0)),
        ),
        compiler_params=cparams,
    )(x2, w_pad, b_vec, labels_i)

    predScore = ps[:N]                                # (N, 2) softmax probs
    nloss = jnp.sum(loss_part) / jnp.float32(N)       # mean CE over true N
    predLabel = jnp.round(predScore[:, 1])
    correctNum = jnp.sum(corr_part)
    return nloss, predScore, predLabel, correctNum


if __name__ == "__main__":
    key = jax.random.PRNGKey(0)
    k_x, k_w, k_b, k_l = jax.random.split(key, 4)

    fc_weight = 0.02 * jax.random.normal(k_w, (NUM_CLASSES, FEAT), jnp.float32)
    fc_bias = 0.01 * jax.random.normal(k_b, (NUM_CLASSES,), jnp.float32)

    def reference(xr, labelsr):
        logits = xr.reshape(xr.shape[0], FEAT) @ fc_weight.T + fc_bias
        probs = jax.nn.softmax(logits, axis=-1)
        logp = jax.nn.log_softmax(logits, axis=-1)
        nloss = -jnp.mean(jnp.take_along_axis(logp, labelsr[:, None], axis=1))
        pred_label = jnp.round(probs)[:, 1]
        correct = jnp.sum((pred_label == labelsr).astype(jnp.float32))
        return logits, probs, nloss, pred_label, correct

    # --- small single-block case (N=8) ---
    N = 8
    x = jax.random.normal(k_x, (N, 1, FEAT), jnp.float32)
    labels = jax.random.bernoulli(k_l, 0.5, (N,)).astype(jnp.int32)

    nloss, predScore, predLabel, correctNum = loss_av_forward(
        x, fc_weight, fc_bias, labels)
    jax.block_until_ready((nloss, predScore, predLabel, correctNum))
    predScore_infer = loss_av_forward(x, fc_weight, fc_bias, None)
    jax.block_until_ready(predScore_infer)

    logits_r, probs_r, nloss_r, predLabel_r, correct_r = reference(x, labels)
    assert jnp.allclose(nloss, nloss_r, atol=1e-5), (nloss, nloss_r)
    assert jnp.allclose(predScore, probs_r, atol=1e-5)
    assert jnp.allclose(predLabel, predLabel_r, atol=1e-5)
    assert jnp.allclose(correctNum, correct_r, atol=1e-5)
    assert jnp.allclose(predScore_infer, logits_r[:, 1], atol=1e-5)

    # --- multi-block + ragged tail case (N=20, tile=8 -> grid of 3 blocks) ---
    N2 = 20
    k_x2, k_l2 = jax.random.split(k_x)
    x_big = jax.random.normal(k_x2, (N2, 1, FEAT), jnp.float32)
    labels_big = jax.random.bernoulli(k_l2, 0.5, (N2,)).astype(jnp.int32)

    nloss2, predScore2, predLabel2, correctNum2 = loss_av_forward(
        x_big, fc_weight, fc_bias, labels_big, tile=8)
    jax.block_until_ready((nloss2, predScore2, predLabel2, correctNum2))
    infer2 = loss_av_forward(x_big, fc_weight, fc_bias, None, tile=8)
    jax.block_until_ready(infer2)

    logits2_r, probs2_r, nloss2_r, predLabel2_r, correct2_r = reference(
        x_big, labels_big)
    assert jnp.allclose(nloss2, nloss2_r, atol=1e-5), (nloss2, nloss2_r)
    assert jnp.allclose(predScore2, probs2_r, atol=1e-5)
    assert jnp.allclose(predLabel2, predLabel2_r, atol=1e-5)
    assert jnp.allclose(correctNum2, correct2_r, atol=1e-5)
    assert jnp.allclose(infer2, logits2_r[:, 1], atol=1e-5)

    print("KERNEL_OK")
</pallas_src>

<mosaic_0001>
module attributes {stable_mosaic.version = 11 : i64} {
  func.func @_train_kernel(%arg0: i32, %arg1: memref<8x256xf32, #tpu.memory_space<vmem>>, %arg2: memref<256x128xf32, #tpu.memory_space<vmem>>, %arg3: memref<2xf32, #tpu.memory_space<smem>>, %arg4: memref<8x1xi32, #tpu.memory_space<vmem>>, %arg5: memref<8x2xf32, #tpu.memory_space<vmem>>, %arg6: memref<1x1x1xf32, #tpu.memory_space<vmem>>, %arg7: memref<1x1x1xf32, #tpu.memory_space<vmem>>) attributes {dimension_semantics = [#tpu.dimension_semantics<parallel>], iteration_bounds = array<i64: 1>, scalar_prefetch = 0 : i64, scratch_operands = 0 : i64, tpu.core_type = #tpu.core_type<tc>, window_params = [{transform_indices = @transform_0, window_bounds = array<i64: 8, 256>}, {pipeline_mode = #tpu.pipeline_mode<synchronous>, transform_indices = @transform_1, window_bounds = array<i64: 256, 128>}, {transform_indices = @transform_2, window_bounds = array<i64: 2>}, {transform_indices = @transform_3, window_bounds = array<i64: 8, 1>}, {transform_indices = @transform_4, window_bounds = array<i64: 8, 2>}, {transform_indices = @transform_5, window_bounds = array<i64: 1, 1, 1>}, {transform_indices = @transform_6, window_bounds = array<i64: 1, 1, 1>}]} {
    %c0 = arith.constant 0 : index
    %c0_0 = arith.constant 0 : index
    %0 = vector.load %arg1[%c0, %c0_0] : memref<8x256xf32, #tpu.memory_space<vmem>>, vector<8x256xf32>
    %c0_1 = arith.constant 0 : index
    %c0_2 = arith.constant 0 : index
    %1 = vector.load %arg2[%c0_1, %c0_2] : memref<256x128xf32, #tpu.memory_space<vmem>>, vector<256x128xf32>
    %cst = arith.constant dense<0.000000e+00> : vector<8x128xf32>
    %2 = tpu.matmul %0, %1, %cst {dimension_numbers = #tpu.dot_dimension_numbers<[1], [0], [0], [1], [0, 0, 1, 1], [], []>} : vector<8x256xf32>, vector<256x128xf32>, vector<8x128xf32> -> vector<8x128xf32>
    %3 = vector.extract_strided_slice %2 {offsets = [0, 0], sizes = [8, 1], strides = [1, 1]} : vector<8x128xf32> to vector<8x1xf32>
    %c0_3 = arith.constant 0 : index
    %4 = memref.load %arg3[%c0_3] : memref<2xf32, #tpu.memory_space<smem>>
    %5 = vector.broadcast %4 : f32 to vector<8x1xf32>
    %6 = arith.addf %3, %5 : vector<8x1xf32>
    %7 = vector.extract_strided_slice %2 {offsets = [0, 1], sizes = [8, 1], strides = [1, 1]} : vector<8x128xf32> to vector<8x1xf32>
    %c1 = arith.constant 1 : index
    %8 = memref.load %arg3[%c1] : memref<2xf32, #tpu.memory_space<smem>>
    %9 = vector.broadcast %8 : f32 to vector<8x1xf32>
    %10 = arith.addf %7, %9 : vector<8x1xf32>
    %11 = arith.subf %10, %6 : vector<8x1xf32>
    %cst_4 = arith.constant 0.000000e+00 : f32
    %12 = vector.broadcast %cst_4 : f32 to vector<8x1xf32>
    %13 = arith.subf %12, %11 : vector<8x1xf32>
    %14 = math.exp %13 : vector<8x1xf32>
    %cst_5 = arith.constant 1.000000e+00 : f32
    %15 = vector.broadcast %cst_5 : f32 to vector<8x1xf32>
    %16 = arith.addf %15, %14 : vector<8x1xf32>
    %cst_6 = arith.constant 1.000000e+00 : f32
    %17 = vector.broadcast %cst_6 : f32 to vector<8x1xf32>
    %18 = arith.divf %17, %16 : vector<8x1xf32>
    %cst_7 = arith.constant 1.000000e+00 : f32
    %19 = vector.broadcast %cst_7 : f32 to vector<8x1xf32>
    %20 = arith.subf %19, %18 : vector<8x1xf32>
    %c0_8 = arith.constant 0 : index
    %c0_9 = arith.constant 0 : index
    %21 = vector.load %arg4[%c0_8, %c0_9] : memref<8x1xi32, #tpu.memory_space<vmem>>, vector<8x1xi32>
    %c1_i32 = arith.constant 1 : i32
    %22 = vector.broadcast %c1_i32 : i32 to vector<8x1xi32>
    %23 = arith.cmpi eq, %21, %22 : vector<8x1xi32>
    %cst_10 = arith.constant 0.000000e+00 : f32
    %24 = vector.broadcast %cst_10 : f32 to vector<8x1xf32>
    %25 = arith.subf %24, %11 : vector<8x1xf32>
    %26 = arith.select %23, %25, %11 : vector<8x1xi1>, vector<8x1xf32>
    %cst_11 = arith.constant 0.000000e+00 : f32
    %27 = vector.broadcast %cst_11 : f32 to vector<8x1xf32>
    %28 = arith.maximumf %26, %27 : vector<8x1xf32>
    %29 = math.absf %26 : vector<8x1xf32>
    %cst_12 = arith.constant 0.000000e+00 : f32
    %30 = vector.broadcast %cst_12 : f32 to vector<8x1xf32>
    %31 = arith.subf %30, %29 : vector<8x1xf32>
    %32 = math.exp %31 : vector<8x1xf32>
    %cst_13 = arith.constant 1.000000e+00 : f32
    %33 = vector.broadcast %cst_13 : f32 to vector<8x1xf32>
    %34 = arith.addf %33, %32 : vector<8x1xf32>
    %35 = math.log %34 : vector<8x1xf32>
    %36 = arith.addf %28, %35 : vector<8x1xf32>
    %37 = math.roundeven %18 : vector<8x1xf32>
    %38 = arith.sitofp %21 : vector<8x1xi32> to vector<8x1xf32>
    %39 = arith.cmpf oeq, %37, %38 : vector<8x1xf32>
    %40 = arith.extui %39 : vector<8x1xi1> to vector<8x1xi32>
    %41 = arith.sitofp %40 : vector<8x1xi32> to vector<8x1xf32>
    %c8_i32 = arith.constant 8 : i32
    %42 = arith.muli %arg0, %c8_i32 : i32
    %43 = tpu.iota {dimensions = array<i32: 0>} : vector<8x1xi32>
    %44 = vector.broadcast %42 : i32 to vector<8x1xi32>
    %45 = arith.addi %44, %43 : vector<8x1xi32>
    %c8_i32_14 = arith.constant 8 : i32
    %46 = vector.broadcast %c8_i32_14 : i32 to vector<8x1xi32>
    %47 = arith.cmpi slt, %45, %46 : vector<8x1xi32>
    %48 = arith.extui %47 : vector<8x1xi1> to vector<8x1xi32>
    %49 = arith.sitofp %48 : vector<8x1xi32> to vector<8x1xf32>
    %c0_15 = arith.constant 0 : index
    %c0_16 = arith.constant 0 : index
    %50 = vector.load %arg5[%c0_15, %c0_16] : memref<8x2xf32, #tpu.memory_space<vmem>>, vector<8x1xf32>
    tpu.vector_store %arg5[%c0_15, %c0_16], %20 {strides = array<i32>} : memref<8x2xf32, #tpu.memory_space<vmem>>, vector<8x1xf32>,
    %c0_17 = arith.constant 0 : index
    %c1_18 = arith.constant 1 : index
    %51 = vector.load %arg5[%c0_17, %c1_18] : memref<8x2xf32, #tpu.memory_space<vmem>>, vector<8x1xf32>
    tpu.vector_store %arg5[%c0_17, %c1_18], %18 {strides = array<i32>} : memref<8x2xf32, #tpu.memory_space<vmem>>, vector<8x1xf32>,
    %52 = arith.mulf %36, %49 : vector<8x1xf32>
    %cst_19 = arith.constant dense<0.000000e+00> : vector<1xf32>
    %53 = vector.multi_reduction <add>, %52, %cst_19 [0] : vector<8x1xf32> to vector<1xf32>
    %54 = vector.shape_cast %53 : vector<1xf32> to vector<1x1xf32>
    %55 = vector.shape_cast %54 : vector<1x1xf32> to vector<1x1x1xf32>
    %c0_20 = arith.constant 0 : index
    %c0_21 = arith.constant 0 : index
    %c0_22 = arith.constant 0 : index
    %56 = vector.load %arg6[%c0_20, %c0_21, %c0_22] : memref<1x1x1xf32, #tpu.memory_space<vmem>>, vector<1x1x1xf32>
    tpu.vector_store %arg6[%c0_20, %c0_21, %c0_22], %55 {strides = array<i32>} : memref<1x1x1xf32, #tpu.memory_space<vmem>>, vector<1x1x1xf32>,
    %57 = arith.mulf %41, %49 : vector<8x1xf32>
    %cst_23 = arith.constant dense<0.000000e+00> : vector<1xf32>
    %58 = vector.multi_reduction <add>, %57, %cst_23 [0] : vector<8x1xf32> to vector<1xf32>
    %59 = vector.shape_cast %58 : vector<1xf32> to vector<1x1xf32>
    %60 = vector.shape_cast %59 : vector<1x1xf32> to vector<1x1x1xf32>
    %c0_24 = arith.constant 0 : index
    %c0_25 = arith.constant 0 : index
    %c0_26 = arith.constant 0 : index
    %61 = vector.load %arg7[%c0_24, %c0_25, %c0_26] : memref<1x1x1xf32, #tpu.memory_space<vmem>>, vector<1x1x1xf32>
    tpu.vector_store %arg7[%c0_24, %c0_25, %c0_26], %60 {strides = array<i32>} : memref<1x1x1xf32, #tpu.memory_space<vmem>>, vector<1x1x1xf32>,
    return
  }
  func.func @transform_0(%arg0: i32) -> (i32, i32) {
    %c0_i32 = arith.constant 0 : i32
    %c0_i32_0 = arith.constant 0 : i32
    return %arg0, %c0_i32 : i32, i32
  }
  func.func @transform_1(%arg0: i32) -> (i32, i32) {
    %c0_i32 = arith.constant 0 : i32
    %c0_i32_0 = arith.constant 0 : i32
    %c0_i32_1 = arith.constant 0 : i32
    return %c0_i32, %c0_i32_0 : i32, i32
  }
  func.func @transform_2(%arg0: i32) -> i32 {
    %c0_i32 = arith.constant 0 : i32
    %c0_i32_0 = arith.constant 0 : i32
    return %c0_i32 : i32
  }
  func.func @transform_3(%arg0: i32) -> (i32, i32) {
    %c0_i32 = arith.constant 0 : i32
    %c0_i32_0 = arith.constant 0 : i32
    return %arg0, %c0_i32 : i32, i32
  }
  func.func @transform_4(%arg0: i32) -> (i32, i32) {
    %c0_i32 = arith.constant 0 : i32
    %c0_i32_0 = arith.constant 0 : i32
    return %arg0, %c0_i32 : i32, i32
  }
  func.func @transform_5(%arg0: i32) -> (i32, i32, i32) {
    %c0_i32 = arith.constant 0 : i32
    %c0_i32_0 = arith.constant 0 : i32
    %c0_i32_1 = arith.constant 0 : i32
    return %arg0, %c0_i32, %c0_i32_0 : i32, i32, i32
  }
  func.func @transform_6(%arg0: i32) -> (i32, i32, i32) {
    %c0_i32 = arith.constant 0 : i32
    %c0_i32_0 = arith.constant 0 : i32
    %c0_i32_1 = arith.constant 0 : i32
    return %arg0, %c0_i32, %c0_i32_0 : i32, i32, i32
  }
}

</mosaic_0001>

<llo_original>
// kernel: tpu_custom_call.1
$region0: #{tpu_custom_call.1}
  #allocation0 [shape = 'u32[]', space=smem, size = 0x4, offset = 0x4, fixed_abs, tag = 'smem constant byte address 0x4 - core index']
  #allocation1 [shape = 'u32[144,128]{1,0:T(1,128)}', space=vmem, size = 0x12000, scoped, tag = 'internal scratch']
  %s0 = inlined_call_operand.hbm [shape: f32[8,256], index: 0, kind: input, shape index: {}]
  %s1 = inlined_call_operand.hbm [shape: f32[256,128], index: 1, kind: input, shape index: {}]
  %s2 = inlined_call_operand.vmem [shape: f32[2], index: 2, kind: input, shape index: {}]
  %s3 = inlined_call_operand.vmem [shape: s32[8,1], index: 3, kind: input, shape index: {}]
  %s4 = inlined_call_operand.vmem [shape: f32[8,2], index: 4, kind: output, shape index: {0}]
  %s5 = inlined_call_operand.hbm [shape: f32[1,1,1], index: 5, kind: output, shape index: {1}]
  %s6 = inlined_call_operand.hbm [shape: f32[1,1,1], index: 6, kind: output, shape index: {2}]
  %7 = xla_tuple %s4, %s5, %s6
  %s8 = sld [smem:[#allocation0]]
  $region54: #{tpu_custom_call.1} parent=0
    _
  %s10 = ssub.s32 1, %s8
  %s11 = scalar_select 0, %s10, %s8
  $region1: #{tpu_custom_call.1} parent=0
    #allocation2 [shape = 'u8[8192]{0}', space=vmem, size = 0x2000, scoped, tag = 'input window, operand 0, single buffered']
    #allocation3 [shape = 's32[1]{0}', space=sflag, size = 0x4, scoped, tag = 'scoped memory for tpu_custom_call.1']
    #allocation4 [shape = 's32[1]{0}', space=sflag, size = 0x4, scoped, tag = 'scoped memory for tpu_custom_call.1']
    #allocation5 [shape = 's32[1]{0}', space=sflag, size = 0x4, scoped, tag = 'scoped memory for tpu_custom_call.1']
    #allocation6 [shape = 'u8[131072]{0}', space=vmem, size = 0x20000, scoped, tag = 'input window, operand 1, single buffered']
    #allocation7 [shape = 's32[1]{0}', space=sflag, size = 0x4, scoped, tag = 'scoped memory for tpu_custom_call.1']
    #allocation8 [shape = 'u8[512]{0}', space=smem, size = 0x200, scoped, tag = 'input window, operand 2, single buffered']
    #allocation9 [shape = 'u8[512]{0}', space=vmem, size = 0x400, scoped, tag = 'output window, operand 1, single buffered']
    #allocation10 [shape = 'u8[512]{0}', space=vmem, size = 0x400, scoped, tag = 'output window, operand 2, single buffered']
    #allocation11 [shape = 's32[1]{0}', space=sflag, size = 0x4, scoped, tag = 'scoped memory for tpu_custom_call.1']
    %12 = vsyncpa [#allocation3], 0
    %13 = vsyncpa [#allocation7], 0
    %14 = vsyncpa [#allocation5], 0
    %15 = vsyncpa [#allocation4], 0
    %16 = vsyncpa [#allocation11], 0
    // Predicated region
    $region2: #{tpu_custom_call.1} parent=1 // pred_check
      _
    $region3: #{tpu_custom_call.1} parent=1 // pred_check_branch
      %18 = sbr.rel (0) target = $region5
    $region4: #{tpu_custom_call.1} parent=1 // pred_region
      %s20 = ssub.s32 256, 256
      %21 = vsyncadd [#allocation3], %s20
      %s23 = sshll.u32 [#allocation2], 4
      %s24 = int_to_ptr.vmem [resolvable:$true] %s23
      %26 = dma.hbm_to_vmem [thread:$0]  %s0, 256, %s24, [#allocation3]
    $region5: #{tpu_custom_call.1} parent=1 // pred_fallthru
      _
    // Predicated region
    $region6: #{tpu_custom_call.1} parent=1 // pred_check
      _
    $region7: #{tpu_custom_call.1} parent=1 // pred_check_branch
      %28 = sbr.rel (0) target = $region9
    $region8: #{tpu_custom_call.1} parent=1 // pred_region
      %s30 = ssub.s32 4096, 4096
      %31 = vsyncadd [#allocation7], %s30
      %s32 = sshll.u32 [#allocation6], 4
      %s33 = int_to_ptr.vmem [resolvable:$true] %s32
      %38 = dma.hbm_to_vmem [thread:$0]  %s1, 4096, %s33, [#allocation7], 128, 128, 8
    $region9: #{tpu_custom_call.1} parent=1 // pred_fallthru
      _
    // Predicated region
    $region10: #{tpu_custom_call.1} parent=1 // pred_check
      _
    $region11: #{tpu_custom_call.1} parent=1 // pred_check_branch
      %40 = sbr.rel (0) target = $region13
    $region12: #{tpu_custom_call.1} parent=1 // pred_region
      %s42 = ssub.s32 16, 16
      %43 = vsyncadd [#allocation5], %s42
      %s45 = sshll.u32 %s2, 4
      %s46 = int_to_ptr.vmem [resolvable:$true] %s45
      %48 = dma.vmem_to_smem %s46, 16, [#allocation8], [#allocation5]
    $region13: #{tpu_custom_call.1} parent=1 // pred_fallthru
      _
    // Predicated region
    $region14: #{tpu_custom_call.1} parent=1 // pred_check
      _
    $region15: #{tpu_custom_call.1} parent=1 // pred_check_branch
      %50 = sbr.rel (0) target = $region17
    $region16: #{tpu_custom_call.1} parent=1 // pred_region
      _
    $region17: #{tpu_custom_call.1} parent=1 // pred_fallthru
      _
    // Predicated region
    $region18: #{tpu_custom_call.1} parent=1 // pred_check
      _
    $region19: #{tpu_custom_call.1} parent=1 // pred_check_branch
      %52 = sbr.rel (0) target = $region21
    $region20: #{tpu_custom_call.1} parent=1 // pred_region
      %53 = dma.done [#allocation3], 256
    $region21: #{tpu_custom_call.1} parent=1 // pred_fallthru
      _
    // Predicated region
    $region22: #{tpu_custom_call.1} parent=1 // pred_check
      _
    $region23: #{tpu_custom_call.1} parent=1 // pred_check_branch
      %55 = sbr.rel (0) target = $region25
    $region24: #{tpu_custom_call.1} parent=1 // pred_region
      %56 = dma.done [#allocation7], 4096
    $region25: #{tpu_custom_call.1} parent=1 // pred_fallthru
      _
    // Predicated region
    $region26: #{tpu_custom_call.1} parent=1 // pred_check
      _
    $region27: #{tpu_custom_call.1} parent=1 // pred_check_branch
      %58 = sbr.rel (0) target = $region29
    $region28: #{tpu_custom_call.1} parent=1 // pred_region
      %59 = dma.done [#allocation5], 16
    $region29: #{tpu_custom_call.1} parent=1 // pred_fallthru
      _
    %60 = sfence
    %v61 = vld [vmem:[#allocation2] sm:$0xff]
    %v62 = vld [vmem:[#allocation2 + $0x8] sm:$0xff]
    %v63 = vld [vmem:[#allocation6] sm:$0xff]
    %v64 = vld [vmem:[#allocation6 + $0x8] sm:$0xff]
    %v65 = vld [vmem:[#allocation6 + $0x10] sm:$0xff]
    %v66 = vld [vmem:[#allocation6 + $0x18] sm:$0xff]
    %v67 = vld [vmem:[#allocation6 + $0x20] sm:$0xff]
    %v68 = vld [vmem:[#allocation6 + $0x28] sm:$0xff]
    %v69 = vld [vmem:[#allocation6 + $0x30] sm:$0xff]
    %v70 = vld [vmem:[#allocation6 + $0x38] sm:$0xff]
    %v71 = vld [vmem:[#allocation6 + $0x40] sm:$0xff]
    %v72 = vld [vmem:[#allocation6 + $0x48] sm:$0xff]
    %v73 = vld [vmem:[#allocation6 + $0x50] sm:$0xff]
    %v74 = vld [vmem:[#allocation6 + $0x58] sm:$0xff]
    %v75 = vld [vmem:[#allocation6 + $0x60] sm:$0xff]
    %v76 = vld [vmem:[#allocation6 + $0x68] sm:$0xff]
    %v77 = vld [vmem:[#allocation6 + $0x70] sm:$0xff]
    %v78 = vld [vmem:[#allocation6 + $0x78] sm:$0xff]
    %v79 = vld [vmem:[#allocation6 + $0x80] sm:$0xff]
    %v80 = vld [vmem:[#allocation6 + $0x88] sm:$0xff]
    %v81 = vld [vmem:[#allocation6 + $0x90] sm:$0xff]
    %v82 = vld [vmem:[#allocation6 + $0x98] sm:$0xff]
    %v83 = vld [vmem:[#allocation6 + $0xa0] sm:$0xff]
    %v84 = vld [vmem:[#allocation6 + $0xa8] sm:$0xff]
    %v85 = vld [vmem:[#allocation6 + $0xb0] sm:$0xff]
    %v86 = vld [vmem:[#allocation6 + $0xb8] sm:$0xff]
    %v87 = vld [vmem:[#allocation6 + $0xc0] sm:$0xff]
    %v88 = vld [vmem:[#allocation6 + $0xc8] sm:$0xff]
    %v89 = vld [vmem:[#allocation6 + $0xd0] sm:$0xff]
    %v90 = vld [vmem:[#allocation6 + $0xd8] sm:$0xff]
    %v91 = vld [vmem:[#allocation6 + $0xe0] sm:$0xff]
    %v92 = vld [vmem:[#allocation6 + $0xe8] sm:$0xff]
    %v93 = vld [vmem:[#allocation6 + $0xf0] sm:$0xff]
    %v94 = vld [vmem:[#allocation6 + $0xf8] sm:$0xff]
    %95 = vmatprep.subr.mxu0 0.0
    %96 = vmatpush1.msra.mxu0 %v63
    %97 = vmatprep.subr.mxu0 0.0
    %98 = vmatpush1.msra.mxu0 %v64
    %99 = vmatprep.subr.mxu0 0.0
    %100 = vmatpush1.msra.mxu0 %v65
    %101 = vmatprep.subr.mxu0 0.0
    %102 = vmatpush1.msra.mxu0 %v66
    %103 = vmatprep.subr.mxu0 0.0
    %104 = vmatpush1.msra.mxu0 %v67
    %105 = vmatprep.subr.mxu0 0.0
    %106 = vmatpush1.msra.mxu0 %v68
    %107 = vmatprep.subr.mxu0 0.0
    %108 = vmatpush1.msra.mxu0 %v69
    %109 = vmatprep.subr.mxu0 0.0
    %110 = vmatpush1.msra.mxu0 %v70
    %111 = vmatprep.subr.mxu0 0.0
    %112 = vmatpush1.msra.mxu0 %v71
    %113 = vmatprep.subr.mxu0 0.0
    %114 = vmatpush1.msra.mxu0 %v72
    %115 = vmatprep.subr.mxu0 0.0
    %116 = vmatpush1.msra.mxu0 %v73
    %117 = vmatprep.subr.mxu0 0.0
    %118 = vmatpush1.msra.mxu0 %v74
    %119 = vmatprep.subr.mxu0 0.0
    %120 = vmatpush1.msra.mxu0 %v75
    %121 = vmatprep.subr.mxu0 0.0
    %122 = vmatpush1.msra.mxu0 %v76
    %123 = vmatprep.subr.mxu0 0.0
    %124 = vmatpush1.msra.mxu0 %v77
    %125 = vmatprep.subr.mxu0 0.0
    %126 = vmatpush1.msra.mxu0 %v78
    %127 = vmatprep.subr.mxu0 0.0
    %128 = vmatpush1.msra.mxu0 %v79
    %129 = vmatprep.subr.mxu0 0.0
    %130 = vmatpush1.msra.mxu0 %v80
    %131 = vmatprep.subr.mxu0 0.0
    %132 = vmatpush1.msra.mxu0 %v81
    %133 = vmatprep.subr.mxu0 0.0
    %134 = vmatpush1.msra.mxu0 %v82
    %135 = vmatprep.subr.mxu0 0.0
    %136 = vmatpush1.msra.mxu0 %v83
    %137 = vmatprep.subr.mxu0 0.0
    %138 = vmatpush1.msra.mxu0 %v84
    %139 = vmatprep.subr.mxu0 0.0
    %140 = vmatpush1.msra.mxu0 %v85
    %141 = vmatprep.subr.mxu0 0.0
    %142 = vmatpush1.msra.mxu0 %v86
    %143 = vmatprep.subr.mxu0 0.0
    %144 = vmatpush1.msra.mxu0 %v87
    %145 = vmatprep.subr.mxu0 0.0
    %146 = vmatpush1.msra.mxu0 %v88
    %147 = vmatprep.subr.mxu0 0.0
    %148 = vmatpush1.msra.mxu0 %v89
    %149 = vmatprep.subr.mxu0 0.0
    %150 = vmatpush1.msra.mxu0 %v90
    %151 = vmatprep.subr.mxu0 0.0
    %152 = vmatpush1.msra.mxu0 %v91
    %153 = vmatprep.subr.mxu0 0.0
    %154 = vmatpush1.msra.mxu0 %v92
    %155 = vmatprep.subr.mxu0 0.0
    %156 = vmatpush1.msra.mxu0 %v93
    %157 = vmatprep.subr.mxu0 0.0
    %158 = vmatpush1.msra.mxu0 %v94
    %159 = vmatprep.mubr.f32.mxu0 %v62
    %160 = vmatmul.mubr.f32.gmra.mrb[0].mxu0 %v61
    %v161 = vpop.f32.mrb[0].mxu0
    %v162 = vadd.f32 0.0, %v161
    %v163 = vpop.f32.mrb[0].mxu0
    %164 = vdwg.mxu0
    %s165 = sld [smem:[#allocation8]]
    %v166 = vstv %s165
    %v167 = vadd.f32 %v162, %v166
    %s168 = sld [smem:[#allocation8 + $0x1]]
    %v169 = vstv %s168
    %v170 = vadd.f32 %v162, %v169
    %172 = vrot.lane.b32.xlu0 %v167, 1
    %v173 = vpop.permute.xlu0 %172
    %v175 = vsub.f32 %v170, %v173
    %v176 = vsub.f32 0.0, %v175
    %v177 = vmul.f32 %v176, 1.442695
    %v178 = vpow.pop %v177
    %v179 = vadd.f32 %v178, 1.0
    %v180 = vrcp.pop %v179
    %v181 = vmul.f32 1.0, %v180
    %v182 = vsub.f32 1.0, %v181
    %v183 = vld [vmem:[%s3] sm:$0xff]
    %vm184 = vcmp.eq.s32.totalorder %v183, 1
    %186 = vrot.lane.b32.xlu0 %v176, 127
    %v187 = vpop.permute.xlu0 %186
    %190 = vrot.lane.b32.xlu0 %v175, 127
    %v191 = vpop.permute.xlu0 %190
    %v193 = vsel %vm184, %v187, %v191
    %v194 = vmax.f32 %v193, 0.0
    %v195 = vand.u32 2147483647, %v193
    %v196 = vsub.f32 0.0, %v195
    %v197 = vmul.f32 %v196, 1.442695
    %v198 = vpow.pop %v197
    %v199 = vadd.f32 %v198, 1.0
    %v200 = vlog2.pop %v199
    %v201 = vmul.f32 %v200, 0.6931472
    %v202 = vadd.f32 %v194, %v201
    %v203 = vround.ne.pseudo %v181
    %v204 = vcvt.s32.f32 %v183
    %206 = vrot.lane.b32.xlu0 %v204, 1
    %v207 = vpop.permute.xlu0 %206
    %vm209 = vcmp.eq.f32.partialorder %v203, %v207
    %v210 = vsel %vm209, 1, 0
    %v211 = vcvt.s32.f32 %v210
    %s212 = smul.u32 0, 8
    %v213 = vlaneseq
    %v214 = vshrl.u32 %v213, 7
    %v215 = vstv %s212
    %v216 = vadd.s32 %v215, %v214
    %vm217 = vcmp.lt.s32.totalorder %v216, 8
    %v218 = vsel %vm217, 1, 0
    %v219 = vcvt.s32.f32 %v218
    %221 = vrot.lane.b32.xlu0 %v182, 127
    %v222 = vpop.permute.xlu0 %221
    %vm224 = vcmask 7168
    %225 = vst.msk [vmem:[%s4] sm:$0xff] %vm224, %v222
    %vm226 = vcmask 15368
    %227 = vst.msk [vmem:[%s4] sm:$0xff] %vm226, %v181
    %v228 = vmul.f32 %v202, %v219
    %v229 = vsel %vm224, %v228, 0.0
    %v230 = vrot.slane %v229, 4
    %v231 = vadd.f32 %v229, %v230
    %v232 = vrot.slane %v231, 2
    %v233 = vadd.f32 %v231, %v232
    %v234 = vrot.slane %v233, 1
    %v235 = vadd.f32 %v233, %v234
    %vm236 = vcmask 0
    %237 = vst.msk [vmem:[#allocation9] sm:$0x1] %vm236, %v235
    %v238 = vmul.f32 %v211, %v219
    %v239 = vsel %vm226, %v238, 0.0
    %v240 = vrot.slane %v239, 4
    %v241 = vadd.f32 %v239, %v240
    %v242 = vrot.slane %v241, 2
    %v243 = vadd.f32 %v241, %v242
    %v244 = vrot.slane %v243, 1
    %v245 = vadd.f32 %v243, %v244
    %247 = vrot.lane.b32.xlu0 %v245, 127
    %v248 = vpop.permute.xlu0 %247
    %250 = vst.msk [vmem:[#allocation10] sm:$0x1] %vm236, %v248
    // Predicated region
    $region30: #{tpu_custom_call.1} parent=1 // pred_check
      _
    $region31: #{tpu_custom_call.1} parent=1 // pred_check_branch
      %252 = sbr.rel (0) target = $region33
    $region32: #{tpu_custom_call.1} parent=1 // pred_region
      _
    $region33: #{tpu_custom_call.1} parent=1 // pred_fallthru
      _
    // Predicated region
    $region34: #{tpu_custom_call.1} parent=1 // pred_check
      _
    $region35: #{tpu_custom_call.1} parent=1 // pred_check_branch
      %254 = sbr.rel (0) target = $region37
    $region36: #{tpu_custom_call.1} parent=1 // pred_region
      %s256 = ssub.s32 16, 16
      %257 = vsyncadd [#allocation4], %s256
      %s259 = sshll.u32 [#allocation9], 4
      %s260 = int_to_ptr.vmem [resolvable:$true] %s259
      %262 = dma.vmem_to_hbm [thread:$0]  %s260, 16, %s5, [#allocation4]
    $region37: #{tpu_custom_call.1} parent=1 // pred_fallthru
      _
    // Predicated region
    $region38: #{tpu_custom_call.1} parent=1 // pred_check
      _
    $region39: #{tpu_custom_call.1} parent=1 // pred_check_branch
      %264 = sbr.rel (0) target = $region41
    $region40: #{tpu_custom_call.1} parent=1 // pred_region
      %s266 = ssub.s32 16, 16
      %267 = vsyncadd [#allocation11], %s266
      %s269 = sshll.u32 [#allocation10], 4
      %s270 = int_to_ptr.vmem [resolvable:$true] %s269
      %272 = dma.vmem_to_hbm [thread:$0]  %s270, 16, %s6, [#allocation11]
    $region41: #{tpu_custom_call.1} parent=1 // pred_fallthru
      _
    // Predicated region
    $region42: #{tpu_custom_call.1} parent=1 // pred_check
      _
    $region43: #{tpu_custom_call.1} parent=1 // pred_check_branch
      %274 = sbr.rel (0) target = $region45
    $region44: #{tpu_custom_call.1} parent=1 // pred_region
      _
    $region45: #{tpu_custom_call.1} parent=1 // pred_fallthru
      _
    // Predicated region
    $region46: #{tpu_custom_call.1} parent=1 // pred_check
      _
    $region47: #{tpu_custom_call.1} parent=1 // pred_check_branch
      %276 = sbr.rel (0) target = $region49
    $region48: #{tpu_custom_call.1} parent=1 // pred_region
      %277 = dma.done [#allocation4], 16
    $region49: #{tpu_custom_call.1} parent=1 // pred_fallthru
      _
    // Predicated region
    $region50: #{tpu_custom_call.1} parent=1 // pred_check
      _
    $region51: #{tpu_custom_call.1} parent=1 // pred_check_branch
      %279 = sbr.rel (0) target = $region53
    $region52: #{tpu_custom_call.1} parent=1 // pred_region
      %280 = dma.done [#allocation11], 16
    $region53: #{tpu_custom_call.1} parent=1 // pred_fallthru
      _
    %281 = vsyncpa [#allocation3], 1
    %282 = vsyncpa [#allocation7], 1
    %283 = vsyncpa [#allocation4], 1
    %284 = vsyncpa [#allocation11], 1
    %285 = vsyncpa [#allocation5], 1

</llo_original>
